<compile_context>
chip_gen: v7x
topology: tpu7x:2x2x1
jax: 0.10.0
libtpu: 0.0.40
codegen_flags: <defaults>
</compile_context>

<pallas_src>
import functools

import jax
import jax.numpy as jnp
from jax import lax
from jax.experimental import pallas as pl
from jax.experimental.pallas import tpu as pltpu

_LN_EPS = 1e-12  # BertLayerNorm eps


def _bert_output_kernel(x_ref, w_ref, b_ref, res_ref, g_ref, beta_ref,
                        o_ref, acc_ref):
    k = pl.program_id(1)

    @pl.when(k == 0)
    def _():
        acc_ref[...] = jnp.zeros_like(acc_ref)

    # MXU partial product, accumulated in f32.
    acc_ref[...] += jnp.dot(x_ref[...], w_ref[...],
                            preferred_element_type=jnp.float32)

    @pl.when(k == pl.num_programs(1) - 1)
    def _():
        # Epilogue: bias + residual + LayerNorm, all in f32.
        y = acc_ref[...] + b_ref[...].astype(jnp.float32)
        # TODO(synk): nn.Dropout omitted (identity in eval/inference forward);
        # training-mode dropout would use pltpu.prng_seed + stateful_bernoulli.
        y = y + res_ref[...].astype(jnp.float32)
        mean = jnp.mean(y, axis=-1, keepdims=True)
        cen = y - mean
        var = jnp.mean(cen * cen, axis=-1, keepdims=True)
        y = cen * lax.rsqrt(var + _LN_EPS)                       # EUP rsqrt
        y = y * g_ref[...].astype(jnp.float32) + beta_ref[...].astype(jnp.float32)
        o_ref[...] = y.astype(o_ref.dtype)


def _pick_tile(dim, pref, align):
    """Largest multiple of `align` that divides `dim` and is <= `pref`;
    falls back to the full dim (full-extent blocks are always legal)."""
    if dim <= pref:
        return dim
    t = (pref // align) * align
    while t >= align:
        if dim % t == 0:
            return t
        t -= align
    return dim


@functools.partial(jax.jit, static_argnames=("block_m", "block_k"))
def bert_output_pallas(hidden_states, input_tensor, weight, bias, gamma, beta,
                       block_m=512, block_k=512):
    """hidden_states: (..., K), input_tensor: (..., N), weight: (N, K)
    (PyTorch Linear layout), bias/gamma/beta: (N,).
    Returns LayerNorm(dense(hidden_states) + input_tensor)."""
    K = hidden_states.shape[-1]
    N = input_tensor.shape[-1]
    out_dtype = input_tensor.dtype

    x = hidden_states.reshape(-1, K)          # (M, K)  — reshape is layout-free
    res = input_tensor.reshape(-1, N)         # (M, N)
    M = x.shape[0]

    # One-time HBM transpose so the kernel runs the natural x @ W layout on
    # the MXU (avoids a per-step XLU transpose inside the kernel).
    w_t = weight.T                            # (K, N)
    b2 = bias.reshape(1, N)
    g2 = gamma.reshape(1, N)
    be2 = beta.reshape(1, N)

    tm = _pick_tile(M, block_m, 8)
    tk = _pick_tile(K, block_k, 128)
    grid = (M // tm, K // tk)

    out = pl.pallas_call(
        _bert_output_kernel,
        out_shape=jax.ShapeDtypeStruct((M, N), out_dtype),
        grid_spec=pltpu.PrefetchScalarGridSpec(
            num_scalar_prefetch=0,
            grid=grid,
            in_specs=[
                pl.BlockSpec((tm, tk), lambda i, k: (i, k)),   # x
                pl.BlockSpec((tk, N), lambda i, k: (k, 0)),    # W^T
                pl.BlockSpec((1, N), lambda i, k: (0, 0)),     # bias
                pl.BlockSpec((tm, N), lambda i, k: (i, 0)),    # residual
                pl.BlockSpec((1, N), lambda i, k: (0, 0)),     # LN gamma
                pl.BlockSpec((1, N), lambda i, k: (0, 0)),     # LN beta
            ],
            out_specs=pl.BlockSpec((tm, N), lambda i, k: (i, 0)),
            scratch_shapes=[pltpu.VMEM((tm, N), jnp.float32)],
        ),
        compiler_params=pltpu.CompilerParams(
            dimension_semantics=("parallel", "arbitrary"),
        ),
    )(x, w_t, b2, res, g2, be2)

    return out.reshape(input_tensor.shape)


def bert_output_ref(hidden_states, input_tensor, weight, bias, gamma, beta):
    # Pure-JAX reference matching the PyTorch module (dropout in eval mode).
    y = hidden_states @ weight.T + bias
    y = y + input_tensor
    mean = jnp.mean(y, axis=-1, keepdims=True)
    var = jnp.mean((y - mean) ** 2, axis=-1, keepdims=True)
    y = (y - mean) / jnp.sqrt(var + _LN_EPS)
    return y * gamma + beta


if __name__ == "__main__":
    key = jax.random.PRNGKey(0)
    k1, k2, k3, k4, k5, k6 = jax.random.split(key, 6)

    batch, seq = 2, 8
    hidden_size, intermediate_size = 32, 256

    hidden_states = jax.random.normal(
        k1, (batch, seq, intermediate_size), dtype=jnp.float32)
    input_tensor = jax.random.normal(
        k2, (batch, seq, hidden_size), dtype=jnp.float32)
    weight = 0.05 * jax.random.normal(
        k3, (hidden_size, intermediate_size), dtype=jnp.float32)
    bias = 0.05 * jax.random.normal(k4, (hidden_size,), dtype=jnp.float32)
    gamma = 1.0 + 0.1 * jax.random.normal(k5, (hidden_size,), dtype=jnp.float32)
    beta = 0.1 * jax.random.normal(k6, (hidden_size,), dtype=jnp.float32)

    # block_k=128 so the small test exercises the multi-step K reduction path
    # (init / accumulate / epilogue phases of the kernel).
    y = bert_output_pallas(hidden_states, input_tensor, weight, bias,
                           gamma, beta, block_m=512, block_k=128)
    jax.block_until_ready(y)

    y_ref = bert_output_ref(hidden_states, input_tensor, weight, bias,
                            gamma, beta)
    assert y.shape == input_tensor.shape and y.dtype == input_tensor.dtype
    max_err = float(jnp.max(jnp.abs(y - y_ref)))
    assert jnp.allclose(y, y_ref, atol=1e-2, rtol=1e-2), f"mismatch: {max_err}"

    print("KERNEL_OK")
</pallas_src>

<mosaic_0001>
module attributes {stable_mosaic.version = 11 : i64} {
  func.func @_bert_output_kernel(%arg0: i32, %arg1: i32, %arg2: memref<16x128xf32, #tpu.memory_space<vmem>>, %arg3: memref<128x32xf32, #tpu.memory_space<vmem>>, %arg4: memref<1x32xf32, #tpu.memory_space<vmem>>, %arg5: memref<16x32xf32, #tpu.memory_space<vmem>>, %arg6: memref<1x32xf32, #tpu.memory_space<vmem>>, %arg7: memref<1x32xf32, #tpu.memory_space<vmem>>, %arg8: memref<16x32xf32, #tpu.memory_space<vmem>>, %arg9: memref<16x32xf32, #tpu.memory_space<vmem>>) attributes {dimension_semantics = [#tpu.dimension_semantics<parallel>, #tpu.dimension_semantics<arbitrary>], iteration_bounds = array<i64: 1, 2>, scalar_prefetch = 0 : i64, scratch_operands = 1 : i64, tpu.core_type = #tpu.core_type<tc>, window_params = [{transform_indices = @transform_0, window_bounds = array<i64: 16, 128>}, {transform_indices = @transform_1, window_bounds = array<i64: 128, 32>}, {pipeline_mode = #tpu.pipeline_mode<synchronous>, transform_indices = @transform_2, window_bounds = array<i64: 1, 32>}, {transform_indices = @transform_3, window_bounds = array<i64: 16, 32>}, {pipeline_mode = #tpu.pipeline_mode<synchronous>, transform_indices = @transform_4, window_bounds = array<i64: 1, 32>}, {pipeline_mode = #tpu.pipeline_mode<synchronous>, transform_indices = @transform_5, window_bounds = array<i64: 1, 32>}, {transform_indices = @transform_6, window_bounds = array<i64: 16, 32>}]} {
    %c0_i32 = arith.constant 0 : i32
    %0 = arith.cmpi eq, %arg1, %c0_i32 : i32
    %1 = arith.extui %0 : i1 to i32
    %c0_i32_0 = arith.constant 0 : i32
    %2 = arith.cmpi ne, %1, %c0_i32_0 : i32
    scf.if %2 {
      %cst_9 = arith.constant 0.000000e+00 : f32
      %12 = vector.broadcast %cst_9 : f32 to vector<16x32xf32>
      %c0_10 = arith.constant 0 : index
      %c0_11 = arith.constant 0 : index
      %13 = vector.load %arg9[%c0_10, %c0_11] : memref<16x32xf32, #tpu.memory_space<vmem>>, vector<16x32xf32>
      tpu.vector_store %arg9[%c0_10, %c0_11], %12 {strides = array<i32>} : memref<16x32xf32, #tpu.memory_space<vmem>>, vector<16x32xf32>,
    } else {
    }
    %c0 = arith.constant 0 : index
    %c0_1 = arith.constant 0 : index
    %3 = vector.load %arg9[%c0, %c0_1] : memref<16x32xf32, #tpu.memory_space<vmem>>, vector<16x32xf32>
    %c0_2 = arith.constant 0 : index
    %c0_3 = arith.constant 0 : index
    %4 = vector.load %arg2[%c0_2, %c0_3] : memref<16x128xf32, #tpu.memory_space<vmem>>, vector<16x128xf32>
    %c0_4 = arith.constant 0 : index
    %c0_5 = arith.constant 0 : index
    %5 = vector.load %arg3[%c0_4, %c0_5] : memref<128x32xf32, #tpu.memory_space<vmem>>, vector<128x32xf32>
    %cst = arith.constant dense<0.000000e+00> : vector<16x32xf32>
    %6 = tpu.matmul %4, %5, %cst {dimension_numbers = #tpu.dot_dimension_numbers<[1], [0], [0], [1], [0, 0, 1, 1], [], []>} : vector<16x128xf32>, vector<128x32xf32>, vector<16x32xf32> -> vector<16x32xf32>
    %7 = arith.addf %3, %6 : vector<16x32xf32>
    %c0_6 = arith.constant 0 : index
    %c0_7 = arith.constant 0 : index
    %8 = vector.load %arg9[%c0_6, %c0_7] : memref<16x32xf32, #tpu.memory_space<vmem>>, vector<16x32xf32>
    tpu.vector_store %arg9[%c0_6, %c0_7], %7 {strides = array<i32>} : memref<16x32xf32, #tpu.memory_space<vmem>>, vector<16x32xf32>,
    %c1_i32 = arith.constant 1 : i32
    %9 = arith.cmpi eq, %arg1, %c1_i32 : i32
    %10 = arith.extui %9 : i1 to i32
    %c0_i32_8 = arith.constant 0 : i32
    %11 = arith.cmpi ne, %10, %c0_i32_8 : i32
    scf.if %11 {
      %c0_9 = arith.constant 0 : index
      %c0_10 = arith.constant 0 : index
      %12 = vector.load %arg9[%c0_9, %c0_10] : memref<16x32xf32, #tpu.memory_space<vmem>>, vector<16x32xf32>
      %c0_11 = arith.constant 0 : index
      %c0_12 = arith.constant 0 : index
      %13 = vector.load %arg4[%c0_11, %c0_12] : memref<1x32xf32, #tpu.memory_space<vmem>>, vector<1x32xf32>
      %14 = vector.broadcast %13 : vector<1x32xf32> to vector<16x32xf32>
      %15 = arith.addf %12, %14 : vector<16x32xf32>
      %c0_13 = arith.constant 0 : index
      %c0_14 = arith.constant 0 : index
      %16 = vector.load %arg5[%c0_13, %c0_14] : memref<16x32xf32, #tpu.memory_space<vmem>>, vector<16x32xf32>
      %17 = arith.addf %15, %16 : vector<16x32xf32>
      %cst_15 = arith.constant dense<0.000000e+00> : vector<16xf32>
      %18 = vector.multi_reduction <add>, %17, %cst_15 [1] : vector<16x32xf32> to vector<16xf32>
      %19 = vector.shape_cast %18 : vector<16xf32> to vector<16x1xf32>
      %cst_16 = arith.constant 3.200000e+01 : f32
      %20 = vector.broadcast %cst_16 : f32 to vector<16x1xf32>
      %21 = arith.divf %19, %20 : vector<16x1xf32>
      %22 = vector.broadcast %21 : vector<16x1xf32> to vector<16x32xf32>
      %23 = arith.subf %17, %22 : vector<16x32xf32>
      %24 = arith.mulf %23, %23 : vector<16x32xf32>
      %cst_17 = arith.constant dense<0.000000e+00> : vector<16xf32>
      %25 = vector.multi_reduction <add>, %24, %cst_17 [1] : vector<16x32xf32> to vector<16xf32>
      %26 = vector.shape_cast %25 : vector<16xf32> to vector<16x1xf32>
      %cst_18 = arith.constant 3.200000e+01 : f32
      %27 = vector.broadcast %cst_18 : f32 to vector<16x1xf32>
      %28 = arith.divf %26, %27 : vector<16x1xf32>
      %cst_19 = arith.constant 9.99999996E-13 : f32
      %29 = vector.broadcast %cst_19 : f32 to vector<16x1xf32>
      %30 = arith.addf %28, %29 : vector<16x1xf32>
      %31 = math.rsqrt %30 : vector<16x1xf32>
      %32 = vector.broadcast %31 : vector<16x1xf32> to vector<16x32xf32>
      %33 = arith.mulf %23, %32 : vector<16x32xf32>
      %c0_20 = arith.constant 0 : index
      %c0_21 = arith.constant 0 : index
      %34 = vector.load %arg6[%c0_20, %c0_21] : memref<1x32xf32, #tpu.memory_space<vmem>>, vector<1x32xf32>
      %35 = vector.broadcast %34 : vector<1x32xf32> to vector<16x32xf32>
      %36 = arith.mulf %33, %35 : vector<16x32xf32>
      %c0_22 = arith.constant 0 : index
      %c0_23 = arith.constant 0 : index
      %37 = vector.load %arg7[%c0_22, %c0_23] : memref<1x32xf32, #tpu.memory_space<vmem>>, vector<1x32xf32>
      %38 = vector.broadcast %37 : vector<1x32xf32> to vector<16x32xf32>
      %39 = arith.addf %36, %38 : vector<16x32xf32>
      %c0_24 = arith.constant 0 : index
      %c0_25 = arith.constant 0 : index
      %40 = vector.load %arg8[%c0_24, %c0_25] : memref<16x32xf32, #tpu.memory_space<vmem>>, vector<16x32xf32>
      tpu.vector_store %arg8[%c0_24, %c0_25], %39 {strides = array<i32>} : memref<16x32xf32, #tpu.memory_space<vmem>>, vector<16x32xf32>,
    } else {
    }
    return
  }
  func.func @transform_0(%arg0: i32, %arg1: i32) -> (i32, i32) {
    %c0_i32 = arith.constant 0 : i32
    return %arg0, %arg1 : i32, i32
  }
  func.func @transform_1(%arg0: i32, %arg1: i32) -> (i32, i32) {
    %c0_i32 = arith.constant 0 : i32
    %c0_i32_0 = arith.constant 0 : i32
    return %arg1, %c0_i32 : i32, i32
  }
  func.func @transform_2(%arg0: i32, %arg1: i32) -> (i32, i32) {
    %c0_i32 = arith.constant 0 : i32
    %c0_i32_0 = arith.constant 0 : i32
    %c0_i32_1 = arith.constant 0 : i32
    return %c0_i32, %c0_i32_0 : i32, i32
  }
  func.func @transform_3(%arg0: i32, %arg1: i32) -> (i32, i32) {
    %c0_i32 = arith.constant 0 : i32
    %c0_i32_0 = arith.constant 0 : i32
    return %arg0, %c0_i32 : i32, i32
  }
  func.func @transform_4(%arg0: i32, %arg1: i32) -> (i32, i32) {
    %c0_i32 = arith.constant 0 : i32
    %c0_i32_0 = arith.constant 0 : i32
    %c0_i32_1 = arith.constant 0 : i32
    return %c0_i32, %c0_i32_0 : i32, i32
  }
  func.func @transform_5(%arg0: i32, %arg1: i32) -> (i32, i32) {
    %c0_i32 = arith.constant 0 : i32
    %c0_i32_0 = arith.constant 0 : i32
    %c0_i32_1 = arith.constant 0 : i32
    return %c0_i32, %c0_i32_0 : i32, i32
  }
  func.func @transform_6(%arg0: i32, %arg1: i32) -> (i32, i32) {
    %c0_i32 = arith.constant 0 : i32
    %c0_i32_0 = arith.constant 0 : i32
    return %arg0, %c0_i32 : i32, i32
  }
}

</mosaic_0001>

<llo_original>
// kernel: bert_output_pallas.1
$region0: #{bert_output_pallas.1}
  #allocation0 [shape = 'u32[]', space=smem, size = 0x4, offset = 0x4, fixed_abs, tag = 'smem constant byte address 0x4 - core index']
  #allocation1 [shape = 'u32[144,128]{1,0:T(1,128)}', space=vmem, size = 0x12000, scoped, tag = 'internal scratch']
  #allocation2 [shape = 'f32[16,32]{1,0:T(8,128)}', space=vmem, size = 0x2000, scoped, tag = 'scratch operand']
  %s0 = inlined_call_operand.vmem [shape: f32[16,256], index: 0, kind: input, shape index: {}]
  %s1 = inlined_call_operand.vmem [shape: f32[256,32], index: 1, kind: input, shape index: {}]
  %s2 = inlined_call_operand.vmem [shape: f32[1,32], index: 2, kind: input, shape index: {}]
  %s3 = inlined_call_operand.vmem [shape: f32[16,32], index: 3, kind: input, shape index: {}]
  %s4 = inlined_call_operand.vmem [shape: f32[1,32], index: 4, kind: input, shape index: {}]
  %s5 = inlined_call_operand.vmem [shape: f32[1,32], index: 5, kind: input, shape index: {}]
  %s6 = inlined_call_operand.hbm [shape: f32[16,32], index: 6, kind: output, shape index: {}]
  %s7 = sld [smem:[#allocation0]]
  $region103: #{bert_output_pallas.1} parent=0
    _
  %s9 = ssub.s32 1, %s7
  %s10 = scalar_select 0, %s9, %s7
  $region1: #{bert_output_pallas.1} parent=0
    #allocation3 [shape = 'u8[16384]{0}', space=vmem, size = 0x4000, scoped, tag = 'input window, operand 0']
    #allocation4 [shape = 'u8[8192]{0}', space=vmem, size = 0x2000, scoped, tag = 'output window, operand 0, single buffered']
    #allocation5 [shape = 's32[2]{0}', space=sflag, size = 0x8, scoped, tag = 'scoped memory for bert_output_pallas.1']
    %11 = vsyncpa [#allocation5], 0
    loop: start=0, step=1, limit=4
    $region2: #{bert_output_pallas.1} parent=1 // loop_pre_header
      _
    $region3: #{bert_output_pallas.1} parent=1 // loop_header
      %s13 = sphi 0, %s17
      %p14 = scmp.ge.s32.totalorder %s13, 4
      %s20 = sphi 0, %s32
      %s21 = sphi 0, %s28
      %s22 = sphi 0, %s20
      %s23 = sphi 0, %s21
      %s24 = sphi 0, %s22
      %s25 = sphi 0, %s23
      %s37 = sphi 0, %s39
      %s40 = sphi 0, %s37
      %s41 = sphi 0, %s40
      %s57 = sphi 0, %s41
      %s63 = sphi 0, %s65
      %s66 = sphi 0, %s63
      %s67 = sphi 0, %s66
      %s83 = sphi 0, %s67
      %s87 = sphi 0, %s87
      %s89 = sphi 0, %s87
      %s90 = sphi 0, %s89
      %s104 = sphi 0, %s90
      %s110 = sphi 0, %s112
      %s113 = sphi 0, %s110
      %s114 = sphi 0, %s113
      %s130 = sphi 0, %s114
      %s134 = sphi 0, %s134
      %s136 = sphi 0, %s134
      %s137 = sphi 0, %s136
      %s151 = sphi 0, %s137
      %s155 = sphi 0, %s155
      %s157 = sphi 0, %s155
      %s158 = sphi 0, %s157
      %s172 = sphi 0, %s158
      %s178 = sphi 0, %s180
      %s181 = sphi 0, %s178
      %s182 = sphi 0, %s181
      %s198 = sphi 0, %s182
    $region4: #{bert_output_pallas.1} parent=1 // loop_header_branch
      %16 = sbr.rel (%p14) target = $region8
    $region5: #{bert_output_pallas.1} parent=1 // loop_body
      %s18 = ssub.s32 %s13, 1
      %s19 = ssub.s32 %s13, 2
      %s26 = sadd.s32 1, %s21
      %p27 = scmp.ge.s32.totalorder %s26, 2
      %s28 = scalar_select %p27, 0, %s26
      %s29 = sadd.s32 1, %s20
      %s30 = scalar_select %p27, %s29, %s20
      %p31 = scmp.ge.s32.totalorder %s30, 1
      %s32 = scalar_select %p31, 0, %s30
      %s33 = ssub.s32 %s20, %s32
      %s34 = ssub.s32 %s21, %s28
      %s35 = sor.u32 %s33, %s34
      %p36 = scmp.eq.s32.totalorder %s35, 0
      %s38 = sadd.s32 %s37, 1
      %s39 = scalar_select %p36, %s37, %s38
      %p42 = pneg %p36
      %p43 = scmp.eq.s32.totalorder %s13, 1
      %p44 = por %p42, %p43
      %p45 = scmp.ne.s32.totalorder %s37, %s40
      %p46 = scmp.eq.s32.totalorder %s13, 0
      %p47 = por %p45, %p46
      %p48 = scmp.ne.s32.totalorder %s37, %s40
      %p49 = scmp.eq.s32.totalorder %s18, 1
      %p50 = por %p48, %p49
      %p51 = scmp.ne.s32.totalorder %s40, %s41
      %p52 = scmp.eq.s32.totalorder %s18, 0
      %p53 = por %p51, %p52
      %p54 = scmp.ne.s32.totalorder %s40, %s41
      %p55 = scmp.eq.s32.totalorder %s19, 1
      %p56 = por %p54, %p55
      %p58 = scmp.ne.s32.totalorder %s41, %s57
      %p59 = scmp.eq.s32.totalorder %s19, 0
      %p60 = por %p58, %p59
      %s61 = ssub.s32 %s21, %s28
      %p62 = scmp.eq.s32.totalorder %s61, 0
      %s64 = sadd.s32 %s63, 1
      %s65 = scalar_select %p62, %s63, %s64
      %p68 = pneg %p62
      %p69 = scmp.eq.s32.totalorder %s13, 1
      %p70 = por %p68, %p69
      %p71 = scmp.ne.s32.totalorder %s63, %s66
      %p72 = scmp.eq.s32.totalorder %s13, 0
      %p73 = por %p71, %p72
      %p74 = scmp.ne.s32.totalorder %s63, %s66
      %p75 = scmp.eq.s32.totalorder %s18, 1
      %p76 = por %p74, %p75
      %p77 = scmp.ne.s32.totalorder %s66, %s67
      %p78 = scmp.eq.s32.totalorder %s18, 0
      %p79 = por %p77, %p78
      %p80 = scmp.ne.s32.totalorder %s66, %s67
      %p81 = scmp.eq.s32.totalorder %s19, 1
      %p82 = por %p80, %p81
      %p84 = scmp.ne.s32.totalorder %s67, %s83
      %p85 = scmp.eq.s32.totalorder %s19, 0
      %p86 = por %p84, %p85
      %s88 = sadd.s32 %s87, 1
      %p91 = scmp.eq.s32.totalorder %s13, 1
      %p92 = scmp.ne.s32.totalorder %s87, %s89
      %p93 = scmp.eq.s32.totalorder %s13, 0
      %p94 = por %p92, %p93
      %p95 = scmp.ne.s32.totalorder %s87, %s89
      %p96 = scmp.eq.s32.totalorder %s18, 1
      %p97 = por %p95, %p96
      %p98 = scmp.ne.s32.totalorder %s89, %s90
      %p99 = scmp.eq.s32.totalorder %s18, 0
      %p100 = por %p98, %p99
      %p101 = scmp.ne.s32.totalorder %s89, %s90
      %p102 = scmp.eq.s32.totalorder %s19, 1
      %p103 = por %p101, %p102
      %p105 = scmp.ne.s32.totalorder %s90, %s104
      %p106 = scmp.eq.s32.totalorder %s19, 0
      %p107 = por %p105, %p106
      %s108 = ssub.s32 %s20, %s32
      %p109 = scmp.eq.s32.totalorder %s108, 0
      %s111 = sadd.s32 %s110, 1
      %s112 = scalar_select %p109, %s110, %s111
      %p115 = pneg %p109
      %p116 = scmp.eq.s32.totalorder %s13, 1
      %p117 = por %p115, %p116
      %p118 = scmp.ne.s32.totalorder %s110, %s113
      %p119 = scmp.eq.s32.totalorder %s13, 0
      %p120 = por %p118, %p119
      %p121 = scmp.ne.s32.totalorder %s110, %s113
      %p122 = scmp.eq.s32.totalorder %s18, 1
      %p123 = por %p121, %p122
      %p124 = scmp.ne.s32.totalorder %s113, %s114
      %p125 = scmp.eq.s32.totalorder %s18, 0
      %p126 = por %p124, %p125
      %p127 = scmp.ne.s32.totalorder %s113, %s114
      %p128 = scmp.eq.s32.totalorder %s19, 1
      %p129 = por %p127, %p128
      %p131 = scmp.ne.s32.totalorder %s114, %s130
      %p132 = scmp.eq.s32.totalorder %s19, 0
      %p133 = por %p131, %p132
      %s135 = sadd.s32 %s134, 1
      %p138 = scmp.eq.s32.totalorder %s13, 1
      %p139 = scmp.ne.s32.totalorder %s134, %s136
      %p140 = scmp.eq.s32.totalorder %s13, 0
      %p141 = por %p139, %p140
      %p142 = scmp.ne.s32.totalorder %s134, %s136
      %p143 = scmp.eq.s32.totalorder %s18, 1
      %p144 = por %p142, %p143
      %p145 = scmp.ne.s32.totalorder %s136, %s137
      %p146 = scmp.eq.s32.totalorder %s18, 0
      %p147 = por %p145, %p146
      %p148 = scmp.ne.s32.totalorder %s136, %s137
      %p149 = scmp.eq.s32.totalorder %s19, 1
      %p150 = por %p148, %p149
      %p152 = scmp.ne.s32.totalorder %s137, %s151
      %p153 = scmp.eq.s32.totalorder %s19, 0
      %p154 = por %p152, %p153
      %s156 = sadd.s32 %s155, 1
      %p159 = scmp.eq.s32.totalorder %s13, 1
      %p160 = scmp.ne.s32.totalorder %s155, %s157
      %p161 = scmp.eq.s32.totalorder %s13, 0
      %p162 = por %p160, %p161
      %p163 = scmp.ne.s32.totalorder %s155, %s157
      %p164 = scmp.eq.s32.totalorder %s18, 1
      %p165 = por %p163, %p164
      %p166 = scmp.ne.s32.totalorder %s157, %s158
      %p167 = scmp.eq.s32.totalorder %s18, 0
      %p168 = por %p166, %p167
      %p169 = scmp.ne.s32.totalorder %s157, %s158
      %p170 = scmp.eq.s32.totalorder %s19, 1
      %p171 = por %p169, %p170
      %p173 = scmp.ne.s32.totalorder %s158, %s172
      %p174 = scmp.eq.s32.totalorder %s19, 0
      %p175 = por %p173, %p174
      %s176 = ssub.s32 %s20, %s32
      %p177 = scmp.eq.s32.totalorder %s176, 0
      %s179 = sadd.s32 %s178, 1
      %s180 = scalar_select %p177, %s178, %s179
      %p183 = pneg %p177
      %p184 = scmp.eq.s32.totalorder %s13, 1
      %p185 = por %p183, %p184
      %p186 = scmp.ne.s32.totalorder %s178, %s181
      %p187 = scmp.eq.s32.totalorder %s13, 0
      %p188 = por %p186, %p187
      %p189 = scmp.ne.s32.totalorder %s178, %s181
      %p190 = scmp.eq.s32.totalorder %s18, 1
      %p191 = por %p189, %p190
      %p192 = scmp.ne.s32.totalorder %s181, %s182
      %p193 = scmp.eq.s32.totalorder %s18, 0
      %p194 = por %p192, %p193
      %p195 = scmp.ne.s32.totalorder %s181, %s182
      %p196 = scmp.eq.s32.totalorder %s19, 1
      %p197 = por %p195, %p196
      %p199 = scmp.ne.s32.totalorder %s182, %s198
      %p200 = scmp.eq.s32.totalorder %s19, 0
      %p201 = por %p199, %p200
      %p202 = scmp.le.s32.totalorder 1, %s13
      %p203 = scmp.lt.s32.totalorder %s13, 3
      %p204 = pnand %p202, %p203
      %p205 = pneg %p204
      // Predicated region
      $region9: #{bert_output_pallas.1} parent=5 // pred_check
        _
      $region10: #{bert_output_pallas.1} parent=5 // pred_check_branch
        %207 = sbr.rel (%p204) target = $region12
      $region11: #{bert_output_pallas.1} parent=5 // pred_region
        %s208 = ssub.s32 %s13, 1
        // Predicated region
        $region13: #{bert_output_pallas.1} parent=11 // pred_check
          %p209 = pneg %p100
        $region14: #{bert_output_pallas.1} parent=11 // pred_check_branch
          %211 = sbr.rel (%p209) target = $region16
        $region15: #{bert_output_pallas.1} parent=11 // pred_region
          _
        $region16: #{bert_output_pallas.1} parent=11 // pred_fallthru
          _
        // Predicated region
        $region17: #{bert_output_pallas.1} parent=11 // pred_check
          %p212 = pneg %p126
        $region18: #{bert_output_pallas.1} parent=11 // pred_check_branch
          %214 = sbr.rel (%p212) target = $region20
        $region19: #{bert_output_pallas.1} parent=11 // pred_region
          %s215 = smul.u32 2, %s22
          %p216 = scmp.lt.s32.totalorder %s215, 1
          %s217 = scalar_select %p216, %s215, 1
          %s218 = smul.addr %s217, 8
          %s219 = scalar_lea.vmem %s3, %s218
          %s220 = smul.u32 2, %s22
        $region20: #{bert_output_pallas.1} parent=11 // pred_fallthru
          _
        // Predicated region
        $region21: #{bert_output_pallas.1} parent=11 // pred_check
          %p221 = pneg %p147
        $region22: #{bert_output_pallas.1} parent=11 // pred_check_branch
          %223 = sbr.rel (%p221) target = $region24
        $region23: #{bert_output_pallas.1} parent=11 // pred_region
          _
        $region24: #{bert_output_pallas.1} parent=11 // pred_fallthru
          _
        // Predicated region
        $region25: #{bert_output_pallas.1} parent=11 // pred_check
          %p224 = pneg %p168
        $region26: #{bert_output_pallas.1} parent=11 // pred_check_branch
          %226 = sbr.rel (%p224) target = $region28
        $region27: #{bert_output_pallas.1} parent=11 // pred_region
          _
        $region28: #{bert_output_pallas.1} parent=11 // pred_fallthru
          _
      $region12: #{bert_output_pallas.1} parent=5 // pred_fallthru
        _
      %p227 = scmp.lt.s32.totalorder %s13, 2
      // Predicated region
      $region29: #{bert_output_pallas.1} parent=5 // pred_check
        %p228 = pneg %p227
      $region30: #{bert_output_pallas.1} parent=5 // pred_check_branch
        %230 = sbr.rel (%p228) target = $region32
      $region31: #{bert_output_pallas.1} parent=5 // pred_region
        // Predicated region
        $region33: #{bert_output_pallas.1} parent=31 // pred_check
          %p231 = pneg %p47
        $region34: #{bert_output_pallas.1} parent=31 // pred_check_branch
          %233 = sbr.rel (%p231) target = $region36
        $region35: #{bert_output_pallas.1} parent=31 // pred_region
          %s234 = sand.u32 %s37, 1
          %s235 = sand.u32 %s37, 1
          %s236 = smul.addr %s235, 16
          %s237 = scalar_lea.vmem [#allocation3], %s236
          %s238 = smul.u32 2, %s20
          %s239 = smul.addr %s238, 2
          %s240 = sadd.s32 %s21, %s239
          %s241 = smul.addr %s240, 8
          %s242 = scalar_lea.vmem %s0, %s241
          // Predicated region
          $region37: #{bert_output_pallas.1} parent=35 // pred_check
            _
          $region38: #{bert_output_pallas.1} parent=35 // pred_check_branch
            %244 = sbr.rel (0) target = $region40
          $region39: #{bert_output_pallas.1} parent=35 // pred_region
            // Predicated region
            $region41: #{bert_output_pallas.1} parent=39 // pred_check
              _
            $region42: #{bert_output_pallas.1} parent=39 // pred_check_branch
              %246 = sbr.rel (0) target = $region44
            $region43: #{bert_output_pallas.1} parent=39 // pred_region
              // Predicated region
              $region56: #{bert_output_pallas.1} parent=43 // pred_check
                _
              $region57: #{bert_output_pallas.1} parent=43 // pred_check_branch
                %263 = sbr.rel (0) target = $region59
              $region58: #{bert_output_pallas.1} parent=43 // pred_region
                loop: start=0, step=1, limit=1
                $region60: #{bert_output_pallas.1} parent=58 // loop_pre_header
                  _
                $region61: #{bert_output_pallas.1} parent=58 // loop_header
                  %s265 = sphi 0, %s269
                  %p266 = scmp.ge.s32.totalorder %s265, 1
                  %s270 = sphi %s242, %s242
                  %s271 = sphi %s237, %s237
                $region62: #{bert_output_pallas.1} parent=58 // loop_header_branch
                  %268 = sbr.rel (%p266) target = $region66
                $region63: #{bert_output_pallas.1} parent=58 // loop_body
                  %v272 = vld [vmem:[%s270] sm:$0xff]
                  %273 = vst [vmem:[%s271] sm:$0xff] %v272
                  %v274 = vld [vmem:[%s270 + $0x10] sm:$0xff]
                  %275 = vst [vmem:[%s271 + $0x8] sm:$0xff] %v274
                $region64: #{bert_output_pallas.1} parent=58 // loop_footer
                  %s269 = sadd.s32 1, %s265
                $region65: #{bert_output_pallas.1} parent=58 // loop_footer_branch
                  %264 = sbr.rel target = $region61
                $region66: #{bert_output_pallas.1} parent=58 // loop_exit
                  _
              $region59: #{bert_output_pallas.1} parent=43 // pred_fallthru
                _
              // Predicated region
              $region67: #{bert_output_pallas.1} parent=43 // pred_check
                _
              $region68: #{bert_output_pallas.1} parent=43 // pred_check_branch
                %277 = sbr.rel target = $region70
              $region69: #{bert_output_pallas.1} parent=43 // pred_region
                _
              $region70: #{bert_output_pallas.1} parent=43 // pred_fallthru
                _
            $region44: #{bert_output_pallas.1} parent=39 // pred_fallthru
              _
            // Predicated region
            $region45: #{bert_output_pallas.1} parent=39 // pred_check
              _
            $region46: #{bert_output_pallas.1} parent=39 // pred_check_branch
              %248 = sbr.rel target = $region48
            $region47: #{bert_output_pallas.1} parent=39 // pred_region
              loop: start=0, step=1, limit=1
              $region49: #{bert_output_pallas.1} parent=47 // loop_pre_header
                _
              $region50: #{bert_output_pallas.1} parent=47 // loop_header
                %s251 = sphi 0, %s255
                %p252 = scmp.ge.s32.totalorder %s251, 1
                %s256 = sphi %s242, %s242
                %s257 = sphi %s237, %s237
              $region51: #{bert_output_pallas.1} parent=47 // loop_header_branch
                %254 = sbr.rel (%p252) target = $region55
              $region52: #{bert_output_pallas.1} parent=47 // loop_body
                %v258 = vld [vmem:[%s256] sm:$0xff]
                %259 = vst [vmem:[%s257] sm:$0xff] %v258
                %v260 = vld [vmem:[%s256 + $0x10] sm:$0xff]
                %261 = vst [vmem:[%s257 + $0x8] sm:$0xff] %v260
              $region53: #{bert_output_pallas.1} parent=47 // loop_footer
                %s255 = sadd.s32 1, %s251
              $region54: #{bert_output_pallas.1} parent=47 // loop_footer_branch
                %250 = sbr.rel target = $region50
              $region55: #{bert_output_pallas.1} parent=47 // loop_exit
                _
            $region48: #{bert_output_pallas.1} parent=39 // pred_fallthru
              _
          $region40: #{bert_output_pallas.1} parent=35 // pred_fallthru
            _
          %278 = vnop
        $region36: #{bert_output_pallas.1} parent=31 // pred_fallthru
          _
        // Predicated region
        $region71: #{bert_output_pallas.1} parent=31 // pred_check
          %p279 = pneg %p73
        $region72: #{bert_output_pallas.1} parent=31 // pred_check_branch
          %281 = sbr.rel (%p279) target = $region74
        $region73: #{bert_output_pallas.1} parent=31 // pred_region
          %s282 = smul.u32 16, %s21
          %p283 = scmp.lt.s32.totalorder %s282, 31
          %s284 = scalar_select %p283, %s282, 31
          %s285 = smul.addr %s284, 8
          %s286 = scalar_lea.vmem %s1, %s285
          %s287 = smul.u32 16, %s21
        $region74: #{bert_output_pallas.1} parent=31 // pred_fallthru
          _
      $region32: #{bert_output_pallas.1} parent=5 // pred_fallthru
        _
      %p288 = scmp.le.s32.totalorder 1, %s13
      %p289 = scmp.lt.s32.totalorder %s13, 3
      %p290 = pnand %p288, %p289
      %p291 = pneg %p290
      // Predicated region
      $region75: #{bert_output_pallas.1} parent=5 // pred_check
        _
      $region76: #{bert_output_pallas.1} parent=5 // pred_check_branch
        %293 = sbr.rel (%p290) target = $region78
      $region77: #{bert_output_pallas.1} parent=5 // pred_region
        %s294 = ssub.s32 %s13, 1
        %s295 = sand.u32 %s40, 1
        %s296 = sand.u32 %s40, 1
        %s297 = smul.addr %s296, 16
        %s298 = scalar_lea.vmem [#allocation3], %s297
        // Predicated region
        $region79: #{bert_output_pallas.1} parent=77 // pred_check
          %p299 = pneg %p53
        $region80: #{bert_output_pallas.1} parent=77 // pred_check_branch
          %301 = sbr.rel (%p299) target = $region82
        $region81: #{bert_output_pallas.1} parent=77 // pred_region
          _
        $region82: #{bert_output_pallas.1} parent=77 // pred_fallthru
          _
        %s302 = sand.u32 %s40, 1
        %s303 = sand.u32 %s40, 1
        %s304 = smul.addr %s303, 16
        %s305 = scalar_lea.vmem [#allocation3], %s304
        %p306 = pneg %p53
        %p307 = pneg %p50
        %s308 = smul.u32 16, %s23
        %p309 = scmp.lt.s32.totalorder %s308, 31
        %s310 = scalar_select %p309, %s308, 31
        %s311 = smul.addr %s310, 8
        %s312 = scalar_lea.vmem %s1, %s311
        %p313 = pneg %p79
        %p314 = pneg %p76
        %p315 = pneg %p100
        %p316 = pneg %p97
        %s317 = smul.u32 2, %s22
        %p318 = scmp.lt.s32.totalorder %s317, 1
        %s319 = scalar_select %p318, %s317, 1
        %s320 = smul.addr %s319, 8
        %s321 = scalar_lea.vmem %s3, %s320
        %p322 = pneg %p126
        %p323 = pneg %p123
        %p324 = pneg %p147
        %p325 = pneg %p144
        %p326 = pneg %p168
        %p327 = pneg %p165
        %p328 = pneg %p194
        %p329 = pneg %p191
        %s330 = smul.u32 2, %s22
        %s331 = smul.u32 16, %s23
        %p332 = scmp.lt.s32.totalorder %s331, 31
        %s333 = scalar_select %p332, %s331, 31
        %s334 = smul.addr %s333, 8
        %s335 = scalar_lea.vmem %s1, %s334
        %s336 = smul.u32 16, %s23
        %s337 = smul.u32 2, %s22
        %p338 = scmp.lt.s32.totalorder %s337, 1
        %s339 = scalar_select %p338, %s337, 1
        %s340 = smul.addr %s339, 8
        %s341 = scalar_lea.vmem %s3, %s340
        %s342 = smul.u32 2, %s22
        %s343 = smul.u32 2, %s22
        %p344 = scmp.eq.s32.totalorder %s23, 0
        // Predicated region
        $region83: #{bert_output_pallas.1} parent=77 // pred_check
          %p345 = pneg %p344
        $region84: #{bert_output_pallas.1} parent=77 // pred_check_branch
          %347 = sbr.rel (%p345) target = $region86
        $region85: #{bert_output_pallas.1} parent=77 // pred_region
          %vm348 = vcmask 261120
          %349 = vst.msk [vmem:[#allocation2] sm:$0xff] %vm348, 0.0
          %350 = vst.msk [vmem:[#allocation2 + $0x8] sm:$0xff] %vm348, 0.0
        $region86: #{bert_output_pallas.1} parent=77 // pred_fallthru
          _
        %v351 = vld [vmem:[#allocation2] sm:$0xff]
        %v352 = vld [vmem:[#allocation2 + $0x8] sm:$0xff]
        %v353 = vld [vmem:[%s298] sm:$0xff]
        %v354 = vld [vmem:[%s298 + $0x8] sm:$0xff]
        %v355 = vld [vmem:[%s335] sm:$0xff]
        %v356 = vld [vmem:[%s335 + $0x8] sm:$0xff]
        %v357 = vld [vmem:[%s335 + $0x10] sm:$0xff]
        %v358 = vld [vmem:[%s335 + $0x18] sm:$0xff]
        %v359 = vld [vmem:[%s335 + $0x20] sm:$0xff]
        %v360 = vld [vmem:[%s335 + $0x28] sm:$0xff]
        %v361 = vld [vmem:[%s335 + $0x30] sm:$0xff]
        %v362 = vld [vmem:[%s335 + $0x38] sm:$0xff]
        %v363 = vld [vmem:[%s335 + $0x40] sm:$0xff]
        %v364 = vld [vmem:[%s335 + $0x48] sm:$0xff]
        %v365 = vld [vmem:[%s335 + $0x50] sm:$0xff]
        %v366 = vld [vmem:[%s335 + $0x58] sm:$0xff]
        %v367 = vld [vmem:[%s335 + $0x60] sm:$0xff]
        %v368 = vld [vmem:[%s335 + $0x68] sm:$0xff]
        %v369 = vld [vmem:[%s335 + $0x70] sm:$0xff]
        %v370 = vld [vmem:[%s335 + $0x78] sm:$0xff]
        %371 = vmatprep.subr.mxu0 0.0
        %372 = vmatpush1.msra.mxu0 %v355
        %373 = vmatprep.subr.mxu0 0.0
        %374 = vmatpush1.msra.mxu0 %v356
        %375 = vmatprep.subr.mxu0 0.0
        %376 = vmatpush1.msra.mxu0 %v357
        %377 = vmatprep.subr.mxu0 0.0
        %378 = vmatpush1.msra.mxu0 %v358
        %379 = vmatprep.subr.mxu0 0.0
        %380 = vmatpush1.msra.mxu0 %v359
        %381 = vmatprep.subr.mxu0 0.0
        %382 = vmatpush1.msra.mxu0 %v360
        %383 = vmatprep.subr.mxu0 0.0
        %384 = vmatpush1.msra.mxu0 %v361
        %385 = vmatprep.subr.mxu0 0.0
        %386 = vmatpush1.msra.mxu0 %v362
        %387 = vmatprep.subr.mxu0 0.0
        %388 = vmatpush1.msra.mxu0 %v363
        %389 = vmatprep.subr.mxu0 0.0
        %390 = vmatpush1.msra.mxu0 %v364
        %391 = vmatprep.subr.mxu0 0.0
        %392 = vmatpush1.msra.mxu0 %v365
        %393 = vmatprep.subr.mxu0 0.0
        %394 = vmatpush1.msra.mxu0 %v366
        %395 = vmatprep.subr.mxu0 0.0
        %396 = vmatpush1.msra.mxu0 %v367
        %397 = vmatprep.subr.mxu0 0.0
        %398 = vmatpush1.msra.mxu0 %v368
        %399 = vmatprep.subr.mxu0 0.0
        %400 = vmatpush1.msra.mxu0 %v369
        %401 = vmatprep.subr.mxu0 0.0
        %402 = vmatpush1.msra.mxu0 %v370
        %403 = vmatprep.subr.mxu0 0.0
        %404 = vmatpush1.msra.mxu0 0.0
        %405 = vmatprep.subr.mxu0 0.0
        %406 = vmatpush1.msra.mxu0 0.0
        %407 = vmatprep.subr.mxu0 0.0
        %408 = vmatpush1.msra.mxu0 0.0
        %409 = vmatprep.subr.mxu0 0.0
        %410 = vmatpush1.msra.mxu0 0.0
        %411 = vmatprep.subr.mxu0 0.0
        %412 = vmatpush1.msra.mxu0 0.0
        %413 = vmatprep.subr.mxu0 0.0
        %414 = vmatpush1.msra.mxu0 0.0
        %415 = vmatprep.subr.mxu0 0.0
        %416 = vmatpush1.msra.mxu0 0.0
        %417 = vmatprep.subr.mxu0 0.0
        %418 = vmatpush1.msra.mxu0 0.0
        %419 = vmatprep.subr.mxu0 0.0
        %420 = vmatpush1.msra.mxu0 0.0
        %421 = vmatprep.subr.mxu0 0.0
        %422 = vmatpush1.msra.mxu0 0.0
        %423 = vmatprep.subr.mxu0 0.0
        %424 = vmatpush1.msra.mxu0 0.0
        %425 = vmatprep.subr.mxu0 0.0
        %426 = vmatpush1.msra.mxu0 0.0
        %427 = vmatprep.subr.mxu0 0.0
        %428 = vmatpush1.msra.mxu0 0.0
        %429 = vmatprep.subr.mxu0 0.0
        %430 = vmatpush1.msra.mxu0 0.0
        %431 = vmatprep.subr.mxu0 0.0
        %432 = vmatpush1.msra.mxu0 0.0
        %433 = vmatprep.subr.mxu0 0.0
        %434 = vmatpush1.msra.mxu0 0.0
        %435 = vmatprep.mubr.f32.mxu0 0.0
        %436 = vmatmul.mubr.f32.gmra.mrb[0].mxu0 %v353
        %v437 = vpop.f32.mrb[0].mxu0
        %v438 = vadd.f32 0.0, %v437
        %v439 = vpop.f32.mrb[0].mxu0
        %440 = vmatprep.mubr.f32.mxu0 0.0
        %441 = vmatmul.mubr.f32.gmra.mrb[0].mxu0 %v354
        %v442 = vpop.f32.mrb[0].mxu0
        %v443 = vadd.f32 0.0, %v442
        %v444 = vpop.f32.mrb[0].mxu0
        %445 = vdwg.mxu0
        %v446 = vadd.f32 %v351, %v438
        %v447 = vadd.f32 %v352, %v443
        %vm448 = vcmask 261120
        %449 = vst.msk [vmem:[#allocation2] sm:$0xff] %vm448, %v446
        %450 = vst.msk [vmem:[#allocation2 + $0x8] sm:$0xff] %vm448, %v447
        %p451 = scmp.eq.s32.totalorder %s23, 1
        // Predicated region
        $region87: #{bert_output_pallas.1} parent=77 // pred_check
          %p452 = pneg %p451
        $region88: #{bert_output_pallas.1} parent=77 // pred_check_branch
          %454 = sbr.rel (%p452) target = $region90
        $region89: #{bert_output_pallas.1} parent=77 // pred_region
          %v455 = vld [vmem:[#allocation2] sm:$0xff]
          %v456 = vld [vmem:[#allocation2 + $0x8] sm:$0xff]
          %v457 = vld [vmem:[%s2] sm:$0x1]
          %v459 = vlaneseq
          %v460 = vshrl.u32 %v459, 7
          %v461 = vsub.s32 0, %v460
          %v462 = vrot.slane %v457, %v461
          %v464 = vadd.f32 %v455, %v462
          %v465 = vadd.f32 %v456, %v462
          %v466 = vld [vmem:[%s341] sm:$0xff]
          %v467 = vld [vmem:[%s341 + $0x8] sm:$0xff]
          %v468 = vadd.f32 %v464, %v466
          %v469 = vadd.f32 %v465, %v467
          %v470 = vsel %vm448, %v468, 0.0
          %471 = vadd.xlane.f32.xlu0 %v470
          %v472 = vpop.xlane.xlu0 %471
          %v473 = vsel %vm448, %v469, 0.0
          %474 = vadd.xlane.f32.xlu0 %v473
          %v475 = vpop.xlane.xlu0 %474
          %v476 = vrcp.pop 32.0
          %v477 = vmul.f32 %v472, %v476
          %v478 = vmul.f32 %v475, %v476
          %v479 = vsub.f32 %v468, %v477
          %v480 = vsub.f32 %v469, %v478
          %v481 = vmul.f32 %v479, %v479
          %v482 = vmul.f32 %v480, %v480
          %v483 = vsel %vm448, %v481, 0.0
          %484 = vadd.xlane.f32.xlu0 %v483
          %v485 = vpop.xlane.xlu0 %484
          %v486 = vsel %vm448, %v482, 0.0
          %487 = vadd.xlane.f32.xlu0 %v486
          %v488 = vpop.xlane.xlu0 %487
          %v489 = vmul.f32 %v485, %v476
          %v490 = vmul.f32 %v488, %v476
          %v491 = vadd.f32 %v489, 1e-12
          %v492 = vadd.f32 %v490, 1e-12
          %v493 = vrsqrt.pop %v491
          %v494 = vrsqrt.pop %v492
          %v495 = vmul.f32 %v479, %v493
          %v496 = vmul.f32 %v480, %v494
          %v497 = vld [vmem:[%s4] sm:$0x1]
          %v499 = vlaneseq
          %v500 = vshrl.u32 %v499, 7
          %v501 = vsub.s32 0, %v500
          %v502 = vrot.slane %v497, %v501
          %v504 = vmul.f32 %v495, %v502
          %v505 = vmul.f32 %v496, %v502
          %v506 = vld [vmem:[%s5] sm:$0x1]
          %v508 = vlaneseq
          %v509 = vshrl.u32 %v508, 7
          %v510 = vsub.s32 0, %v509
          %v511 = vrot.slane %v506, %v510
          %v513 = vadd.f32 %v504, %v511
          %v514 = vadd.f32 %v505, %v511
          %515 = vst.msk [vmem:[#allocation4] sm:$0xff] %vm448, %v513
          %516 = vst.msk [vmem:[#allocation4 + $0x8] sm:$0xff] %vm448, %v514
        $region90: #{bert_output_pallas.1} parent=77 // pred_fallthru
          _
        // Predicated region
        $region91: #{bert_output_pallas.1} parent=77 // pred_check
          %p517 = pneg %p191
        $region92: #{bert_output_pallas.1} parent=77 // pred_check_branch
          %519 = sbr.rel (%p517) target = $region94
        $region93: #{bert_output_pallas.1} parent=77 // pred_region
          %s520 = smul.u32 2, %s22
          %s522 = ssub.s32 256, 256
          %523 = vsyncadd [#allocation5], %s522
          %s524 = smul.addr %s520, 128
          %s525 = scalar_lea.hbm %s6, %s524
          %s526 = sshll.u32 [#allocation4], 4
          %s527 = int_to_ptr.vmem [resolvable:$true] %s526
          %532 = dma.vmem_to_hbm [thread:$0]  %s527, 256, %s525, [#allocation5], 128, 128, 8
        $region94: #{bert_output_pallas.1} parent=77 // pred_fallthru
          _
        // Predicated region
        $region95: #{bert_output_pallas.1} parent=77 // pred_check
          %p533 = pneg %p191
        $region96: #{bert_output_pallas.1} parent=77 // pred_check_branch
          %535 = sbr.rel (%p533) target = $region98
        $region97: #{bert_output_pallas.1} parent=77 // pred_region
          %536 = dma.done [#allocation5], 256
        $region98: #{bert_output_pallas.1} parent=77 // pred_fallthru
          _
      $region78: #{bert_output_pallas.1} parent=5 // pred_fallthru
        _
      %p537 = scmp.le.s32.totalorder 2, %s13
      // Predicated region
      $region99: #{bert_output_pallas.1} parent=5 // pred_check
        %p538 = pneg %p537
      $region100: #{bert_output_pallas.1} parent=5 // pred_check_branch
        %540 = sbr.rel (%p538) target = $region102
      $region101: #{bert_output_pallas.1} parent=5 // pred_region
        %s541 = ssub.s32 %s13, 2
      $region102: #{bert_output_pallas.1} parent=5 // pred_fallthru
        _
    $region6: #{bert_output_pallas.1} parent=1 // loop_footer
      %s17 = sadd.s32 1, %s13
    $region7: #{bert_output_pallas.1} parent=1 // loop_footer_branch
      %12 = sbr.rel target = $region3
    $region8: #{bert_output_pallas.1} parent=1 // loop_exit
      _
    %542 = vsyncpa [#allocation5], 1
    %s543 = scalar_lea.sflag [#allocation5], 1
    %544 = vsyncpa %s543, 1

</llo_original>
